<compile_context>
chip_gen: v7x
topology: tpu7x:2x2x1
jax: 0.10.0
libtpu: 0.0.40
codegen_flags: <defaults>
</compile_context>

<pallas_src>
import jax
import jax.numpy as jnp
from jax.experimental import pallas as pl
from jax.experimental.pallas import tpu as pltpu

IN_DIM = 500
HID_DIM = 300
OUT_DIM = 10   # output_dim of the classifier

NEG_BIG = -1e30  # large finite negative for padded logit lanes (avoids inf-inf)


def _round_up(n, m):
    return ((n + m - 1) // m) * m


def mlp_logsoftmax_kernel(x_ref, w1_ref, b1_ref, w2_ref, b2_ref, o_ref):
    # x: [TM, 500] f32, w1: [500, 384] bf16, b1: [1, 384] f32,
    # w2: [384, 128] bf16, b2: [1, 128] f32, o: [TM, 128] bf16
    x = x_ref[...].astype(jnp.bfloat16)
    h = jnp.dot(x, w1_ref[...],
                preferred_element_type=jnp.float32) + b1_ref[...]

    # TODO(synk): Dropout is identity in eval mode; training-mode random
    # masking is intentionally not applied (deterministic inference kernel).

    logits = jnp.dot(h.astype(jnp.bfloat16), w2_ref[...],
                     preferred_element_type=jnp.float32) + b2_ref[...]

    # log_softmax over dim=1 (the lane axis).  Padded lanes carry -1e30 from
    # b2, so exp(z) there underflows to 0 and the reduction is unaffected.
    m = jnp.max(logits, axis=-1, keepdims=True)
    z = logits - m
    lse = jnp.log(jnp.sum(jnp.exp(z), axis=-1, keepdims=True))
    o_ref[...] = (z - lse).astype(o_ref.dtype)


def prepare_params(w1, b1, w2, b2):
    """Pad/cast the weights ONCE (hoisted out of the per-call wrapper).

    w1: [500, 300], b1: [1, 300], w2: [300, out], b2: [1, out]
    (weights stored as [in, out], i.e. transposed vs PyTorch's [out, in]).
    """
    in_dim, hid = w1.shape
    out_dim = w2.shape[1]
    hid_p = _round_up(hid, 128)      # 300 -> 384
    out_p = _round_up(out_dim, 128)  # 10  -> 128

    w1p = jnp.zeros((in_dim, hid_p), jnp.bfloat16).at[:, :hid].set(
        w1.astype(jnp.bfloat16))
    b1p = jnp.zeros((1, hid_p), jnp.float32).at[:, :hid].set(
        b1.astype(jnp.float32))
    w2p = jnp.zeros((hid_p, out_p), jnp.bfloat16).at[:hid, :out_dim].set(
        w2.astype(jnp.bfloat16))
    b2p = jnp.full((1, out_p), NEG_BIG, jnp.float32).at[:, :out_dim].set(
        b2.astype(jnp.float32))
    return (w1p, b1p, w2p, b2p, out_dim)


def mlp_classifier_forward(x, padded_params, *, tm=512):
    """x: [B, 500] f32; padded_params from prepare_params().

    Returns [B, out_dim] f32 log-probabilities.
    """
    w1p, b1p, w2p, b2p, out_dim = padded_params
    B, in_dim = x.shape
    hid_p = w1p.shape[1]
    out_p = w2p.shape[1]

    # Tile selection:
    #   * cap at the (16-rounded) batch so tiny batches don't pad to 512 rows
    #     (16 keeps bf16-output blocks on native sublane packing),
    #   * for large batches, balance the tiles so the grid has >=2 steps
    #     (lets the "parallel" axis shard across both v7x TensorCores).
    tm = min(tm, _round_up(B, 16))
    n_tiles = max(1, pl.cdiv(B, tm))
    tm = _round_up(pl.cdiv(B, n_tiles), 16)
    b_p = n_tiles * tm

    if b_p != B:
        # Row-only zero padding, same dtype -> cheap; K stays unpadded (500).
        x = jnp.pad(x, ((0, b_p - B), (0, 0)))

    grid = (n_tiles,)
    flops = 2 * b_p * (in_dim * hid_p + hid_p * out_p)
    bytes_accessed = (b_p * in_dim * 4          # x (f32, read)
                      + w1p.size * 2 + b1p.size * 4
                      + w2p.size * 2 + b2p.size * 4
                      + b_p * out_p * 2)        # out (bf16, write)

    out = pl.pallas_call(
        mlp_logsoftmax_kernel,
        out_shape=jax.ShapeDtypeStruct((b_p, out_p), jnp.bfloat16),
        grid=grid,
        in_specs=[
            pl.BlockSpec((tm, in_dim), lambda i: (i, 0)),     # x tile per step
            pl.BlockSpec((in_dim, hid_p), lambda i: (0, 0)),  # weights stay
            pl.BlockSpec((1, hid_p), lambda i: (0, 0)),       # VMEM-resident
            pl.BlockSpec((hid_p, out_p), lambda i: (0, 0)),
            pl.BlockSpec((1, out_p), lambda i: (0, 0)),
        ],
        out_specs=pl.BlockSpec((tm, out_p), lambda i: (i, 0)),
        compiler_params=pltpu.CompilerParams(
            dimension_semantics=("parallel",)),
        cost_estimate=pl.CostEstimate(
            flops=flops,
            transcendentals=b_p * (out_p + 1),   # exp + log in log_softmax
            bytes_accessed=bytes_accessed),
    )(x, w1p, b1p, w2p, b2p)

    # Slice off padded rows / lanes and restore the f32 API dtype.
    return out[:B, :out_dim].astype(jnp.float32)


def init_params(key):
    # Deterministic PyTorch-style Linear init: U(-1/sqrt(fan_in), 1/sqrt(fan_in)).
    k1, k2, k3, k4 = jax.random.split(key, 4)
    bound1 = 1.0 / (IN_DIM ** 0.5)
    bound2 = 1.0 / (HID_DIM ** 0.5)
    # stored as [in, out] (transpose of PyTorch's [out, in])
    w1 = jax.random.uniform(k1, (IN_DIM, HID_DIM), jnp.float32, -bound1, bound1)
    b1 = jax.random.uniform(k2, (1, HID_DIM), jnp.float32, -bound1, bound1)
    w2 = jax.random.uniform(k3, (HID_DIM, OUT_DIM), jnp.float32, -bound2, bound2)
    b2 = jax.random.uniform(k4, (1, OUT_DIM), jnp.float32, -bound2, bound2)
    return w1, b1, w2, b2


def _reference(x, w1, b1, w2, b2):
    h = x @ w1 + b1
    logits = h @ w2 + b2
    return jax.nn.log_softmax(logits, axis=1)


if __name__ == "__main__":
    key = jax.random.PRNGKey(0)
    pkey, xkey = jax.random.split(key)
    w1, b1, w2, b2 = init_params(pkey)

    # One-time weight preparation (padding/casting hoisted out of the forward).
    padded = jax.tree_util.tree_map(jax.block_until_ready,
                                    prepare_params(w1, b1, w2, b2))

    B = 8
    x = jax.random.normal(xkey, (B, IN_DIM), jnp.float32)

    fwd = jax.jit(lambda xx: mlp_classifier_forward(xx, padded))
    out = jax.block_until_ready(fwd(x))

    assert out.shape == (B, OUT_DIM)

    # sanity: log_softmax rows must sum (in prob space) to ~1
    # (bf16 output dtype -> looser tolerance than f32)
    row_sums = jnp.sum(jnp.exp(out), axis=1)
    assert bool(jnp.all(jnp.abs(row_sums - 1.0) < 3e-2))

    # reference check (bf16 operands + bf16 output, f32 accumulation)
    ref = _reference(x, w1, b1, w2, b2)
    assert bool(jnp.max(jnp.abs(out - ref)) < 5e-2)

    print("KERNEL_OK")
</pallas_src>

<mosaic_0001>
module attributes {stable_mosaic.version = 11 : i64} {
  func.func @mlp_logsoftmax_kernel(%arg0: i32, %arg1: memref<16x500xf32, #tpu.memory_space<vmem>>, %arg2: memref<500x384xbf16, #tpu.memory_space<vmem>>, %arg3: memref<1x384xf32, #tpu.memory_space<vmem>>, %arg4: memref<384x128xbf16, #tpu.memory_space<vmem>>, %arg5: memref<1x128xf32, #tpu.memory_space<vmem>>, %arg6: memref<16x128xbf16, #tpu.memory_space<vmem>>) attributes {dimension_semantics = [#tpu.dimension_semantics<parallel>], iteration_bounds = array<i64: 1>, scalar_prefetch = 0 : i64, scratch_operands = 0 : i64, tpu.core_type = #tpu.core_type<tc>, window_params = [{transform_indices = @transform_0, window_bounds = array<i64: 16, 500>}, {pipeline_mode = #tpu.pipeline_mode<synchronous>, transform_indices = @transform_1, window_bounds = array<i64: 500, 384>}, {pipeline_mode = #tpu.pipeline_mode<synchronous>, transform_indices = @transform_2, window_bounds = array<i64: 1, 384>}, {pipeline_mode = #tpu.pipeline_mode<synchronous>, transform_indices = @transform_3, window_bounds = array<i64: 384, 128>}, {pipeline_mode = #tpu.pipeline_mode<synchronous>, transform_indices = @transform_4, window_bounds = array<i64: 1, 128>}, {transform_indices = @transform_5, window_bounds = array<i64: 16, 128>}]} {
    %c0 = arith.constant 0 : index
    %c0_0 = arith.constant 0 : index
    %0 = vector.load %arg1[%c0, %c0_0] : memref<16x500xf32, #tpu.memory_space<vmem>>, vector<16x500xf32>
    %1 = arith.truncf %0 : vector<16x500xf32> to vector<16x500xbf16>
    %c0_1 = arith.constant 0 : index
    %c0_2 = arith.constant 0 : index
    %2 = vector.load %arg2[%c0_1, %c0_2] : memref<500x384xbf16, #tpu.memory_space<vmem>>, vector<500x384xbf16>
    %cst = arith.constant dense<0.000000e+00> : vector<16x384xf32>
    %3 = tpu.matmul %1, %2, %cst {dimension_numbers = #tpu.dot_dimension_numbers<[1], [0], [0], [1], [0, 0, 1, 1], [], []>} : vector<16x500xbf16>, vector<500x384xbf16>, vector<16x384xf32> -> vector<16x384xf32>
    %c0_3 = arith.constant 0 : index
    %c0_4 = arith.constant 0 : index
    %4 = vector.load %arg3[%c0_3, %c0_4] : memref<1x384xf32, #tpu.memory_space<vmem>>, vector<1x384xf32>
    %5 = vector.broadcast %4 : vector<1x384xf32> to vector<16x384xf32>
    %6 = arith.addf %3, %5 : vector<16x384xf32>
    %7 = arith.truncf %6 : vector<16x384xf32> to vector<16x384xbf16>
    %c0_5 = arith.constant 0 : index
    %c0_6 = arith.constant 0 : index
    %8 = vector.load %arg4[%c0_5, %c0_6] : memref<384x128xbf16, #tpu.memory_space<vmem>>, vector<384x128xbf16>
    %cst_7 = arith.constant dense<0.000000e+00> : vector<16x128xf32>
    %9 = tpu.matmul %7, %8, %cst_7 {dimension_numbers = #tpu.dot_dimension_numbers<[1], [0], [0], [1], [0, 0, 1, 1], [], []>} : vector<16x384xbf16>, vector<384x128xbf16>, vector<16x128xf32> -> vector<16x128xf32>
    %c0_8 = arith.constant 0 : index
    %c0_9 = arith.constant 0 : index
    %10 = vector.load %arg5[%c0_8, %c0_9] : memref<1x128xf32, #tpu.memory_space<vmem>>, vector<1x128xf32>
    %11 = vector.broadcast %10 : vector<1x128xf32> to vector<16x128xf32>
    %12 = arith.addf %9, %11 : vector<16x128xf32>
    %cst_10 = arith.constant dense<0xFF800000> : vector<16xf32>
    %13 = vector.multi_reduction <maximumf>, %12, %cst_10 [1] : vector<16x128xf32> to vector<16xf32>
    %14 = vector.shape_cast %13 : vector<16xf32> to vector<16x1xf32>
    %15 = vector.broadcast %14 : vector<16x1xf32> to vector<16x128xf32>
    %16 = arith.subf %12, %15 : vector<16x128xf32>
    %17 = math.exp %16 : vector<16x128xf32>
    %cst_11 = arith.constant dense<0.000000e+00> : vector<16xf32>
    %18 = vector.multi_reduction <add>, %17, %cst_11 [1] : vector<16x128xf32> to vector<16xf32>
    %19 = vector.shape_cast %18 : vector<16xf32> to vector<16x1xf32>
    %20 = math.log %19 : vector<16x1xf32>
    %21 = vector.broadcast %20 : vector<16x1xf32> to vector<16x128xf32>
    %22 = arith.subf %16, %21 : vector<16x128xf32>
    %23 = arith.truncf %22 : vector<16x128xf32> to vector<16x128xbf16>
    %c0_12 = arith.constant 0 : index
    %c0_13 = arith.constant 0 : index
    %24 = vector.load %arg6[%c0_12, %c0_13] : memref<16x128xbf16, #tpu.memory_space<vmem>>, vector<16x128xbf16>
    tpu.vector_store %arg6[%c0_12, %c0_13], %23 {strides = array<i32>} : memref<16x128xbf16, #tpu.memory_space<vmem>>, vector<16x128xbf16>,
    return
  }
  func.func @transform_0(%arg0: i32) -> (i32, i32) {
    %c0_i32 = arith.constant 0 : i32
    %c0_i32_0 = arith.constant 0 : i32
    return %arg0, %c0_i32 : i32, i32
  }
  func.func @transform_1(%arg0: i32) -> (i32, i32) {
    %c0_i32 = arith.constant 0 : i32
    %c0_i32_0 = arith.constant 0 : i32
    %c0_i32_1 = arith.constant 0 : i32
    return %c0_i32, %c0_i32_0 : i32, i32
  }
  func.func @transform_2(%arg0: i32) -> (i32, i32) {
    %c0_i32 = arith.constant 0 : i32
    %c0_i32_0 = arith.constant 0 : i32
    %c0_i32_1 = arith.constant 0 : i32
    return %c0_i32, %c0_i32_0 : i32, i32
  }
  func.func @transform_3(%arg0: i32) -> (i32, i32) {
    %c0_i32 = arith.constant 0 : i32
    %c0_i32_0 = arith.constant 0 : i32
    %c0_i32_1 = arith.constant 0 : i32
    return %c0_i32, %c0_i32_0 : i32, i32
  }
  func.func @transform_4(%arg0: i32) -> (i32, i32) {
    %c0_i32 = arith.constant 0 : i32
    %c0_i32_0 = arith.constant 0 : i32
    %c0_i32_1 = arith.constant 0 : i32
    return %c0_i32, %c0_i32_0 : i32, i32
  }
  func.func @transform_5(%arg0: i32) -> (i32, i32) {
    %c0_i32 = arith.constant 0 : i32
    %c0_i32_0 = arith.constant 0 : i32
    return %arg0, %c0_i32 : i32, i32
  }
}

</mosaic_0001>

<llo_original>
// kernel: _lambda_.1
$region0: #{_lambda_.1}
  #allocation0 [shape = 'u32[]', space=smem, size = 0x4, offset = 0x4, fixed_abs, tag = 'smem constant byte address 0x4 - core index']
  #allocation1 [shape = 'u32[144,128]{1,0:T(1,128)}', space=vmem, size = 0x12000, scoped, tag = 'internal scratch']
  %s0 = inlined_call_operand.vmem [shape: f32[16,500], index: 0, kind: input, shape index: {}]
  %s1 = inlined_call_operand.hbm [shape: bf16[500,384], index: 1, kind: input, shape index: {}]
  %s2 = inlined_call_operand.vmem [shape: f32[1,384], index: 2, kind: input, shape index: {}]
  %s3 = inlined_call_operand.hbm [shape: bf16[384,128], index: 3, kind: input, shape index: {}]
  %s4 = inlined_call_operand.vmem [shape: f32[1,128], index: 4, kind: input, shape index: {}]
  %s5 = inlined_call_operand.vmem [shape: bf16[16,128], index: 5, kind: output, shape index: {}]
  %s6 = sld [smem:[#allocation0]]
  $region38: #{_lambda_.1} parent=0
    _
  %s8 = ssub.s32 1, %s6
  %s9 = scalar_select 0, %s8, %s6
  $region1: #{_lambda_.1} parent=0
    #allocation2 [shape = 'u8[387072]{0}', space=vmem, size = 0x5e800, scoped, tag = 'input window, operand 1, single buffered']
    #allocation3 [shape = 's32[1]{0}', space=sflag, size = 0x4, scoped, tag = 'scoped memory for _lambda_.1']
    #allocation4 [shape = 'u8[98304]{0}', space=vmem, size = 0x18000, scoped, tag = 'input window, operand 3, single buffered']
    #allocation5 [shape = 's32[1]{0}', space=sflag, size = 0x4, scoped, tag = 'scoped memory for _lambda_.1']
    %10 = vsyncpa [#allocation3], 0
    %11 = vsyncpa [#allocation5], 0
    // Predicated region
    $region2: #{_lambda_.1} parent=1 // pred_check
      _
    $region3: #{_lambda_.1} parent=1 // pred_check_branch
      %13 = sbr.rel (0) target = $region5
    $region4: #{_lambda_.1} parent=1 // pred_region
      _
    $region5: #{_lambda_.1} parent=1 // pred_fallthru
      _
    // Predicated region
    $region6: #{_lambda_.1} parent=1 // pred_check
      _
    $region7: #{_lambda_.1} parent=1 // pred_check_branch
      %15 = sbr.rel (0) target = $region9
    $region8: #{_lambda_.1} parent=1 // pred_region
      %s17 = ssub.s32 12096, 12096
      %18 = vsyncadd [#allocation3], %s17
      %s19 = sshll.u32 [#allocation2], 4
      %s20 = int_to_ptr.vmem [resolvable:$true] %s19
      %25 = dma.hbm_to_vmem [thread:$0]  %s1, 12096, %s20, [#allocation3], 192, 192, 12
    $region9: #{_lambda_.1} parent=1 // pred_fallthru
      _
    // Predicated region
    $region10: #{_lambda_.1} parent=1 // pred_check
      _
    $region11: #{_lambda_.1} parent=1 // pred_check_branch
      %27 = sbr.rel (0) target = $region13
    $region12: #{_lambda_.1} parent=1 // pred_region
      _
    $region13: #{_lambda_.1} parent=1 // pred_fallthru
      _
    // Predicated region
    $region14: #{_lambda_.1} parent=1 // pred_check
      _
    $region15: #{_lambda_.1} parent=1 // pred_check_branch
      %29 = sbr.rel (0) target = $region17
    $region16: #{_lambda_.1} parent=1 // pred_region
      %s31 = ssub.s32 3072, 3072
      %32 = vsyncadd [#allocation5], %s31
      %s33 = sshll.u32 [#allocation4], 4
      %s34 = int_to_ptr.vmem [resolvable:$true] %s33
      %39 = dma.hbm_to_vmem [thread:$0]  %s3, 3072, %s34, [#allocation5], 64, 64, 4
    $region17: #{_lambda_.1} parent=1 // pred_fallthru
      _
    // Predicated region
    $region18: #{_lambda_.1} parent=1 // pred_check
      _
    $region19: #{_lambda_.1} parent=1 // pred_check_branch
      %41 = sbr.rel (0) target = $region21
    $region20: #{_lambda_.1} parent=1 // pred_region
      _
    $region21: #{_lambda_.1} parent=1 // pred_fallthru
      _
    // Predicated region
    $region22: #{_lambda_.1} parent=1 // pred_check
      _
    $region23: #{_lambda_.1} parent=1 // pred_check_branch
      %43 = sbr.rel (0) target = $region25
    $region24: #{_lambda_.1} parent=1 // pred_region
      %44 = dma.done [#allocation3], 12096
    $region25: #{_lambda_.1} parent=1 // pred_fallthru
      _
    // Predicated region
    $region26: #{_lambda_.1} parent=1 // pred_check
      _
    $region27: #{_lambda_.1} parent=1 // pred_check_branch
      %46 = sbr.rel (0) target = $region29
    $region28: #{_lambda_.1} parent=1 // pred_region
      %47 = dma.done [#allocation5], 3072
    $region29: #{_lambda_.1} parent=1 // pred_fallthru
      _
    %v49 = vld [vmem:[%s0] sm:$0xff]
    %v50 = vld [vmem:[%s0 + $0x8] sm:$0xff]
    %v51 = vld [vmem:[%s0 + $0x10] sm:$0xff]
    %v52 = vld [vmem:[%s0 + $0x18] sm:$0xff]
    %v53 = vld [vmem:[%s0 + $0x20] sm:$0xff]
    %v54 = vld [vmem:[%s0 + $0x28] sm:$0xff]
    %v55 = vld [vmem:[%s0 + $0x30] sm:$0xff]
    %v56 = vld [vmem:[%s0 + $0x38] sm:$0xff]
    %v57 = vpack.c.bf16 %v53, %v49
    %v58 = vpack.c.bf16 %v54, %v50
    %v59 = vpack.c.bf16 %v55, %v51
    %v60 = vpack.c.bf16 %v56, %v52
    %v61 = vld [vmem:[#allocation2] sm:$0xff]
    %v62 = vld [vmem:[#allocation2 + $0x8] sm:$0xf]
    %v63 = vld [vmem:[#allocation2 + $0xc] sm:$0xff]
    %v64 = vld [vmem:[#allocation2 + $0x14] sm:$0xf]
    %v65 = vld [vmem:[#allocation2 + $0x18] sm:$0xff]
    %v66 = vld [vmem:[#allocation2 + $0x20] sm:$0xf]
    %v67 = vld [vmem:[#allocation2 + $0x24] sm:$0xff]
    %v68 = vld [vmem:[#allocation2 + $0x2c] sm:$0xf]
    %v69 = vld [vmem:[#allocation2 + $0x30] sm:$0xff]
    %v70 = vld [vmem:[#allocation2 + $0x38] sm:$0xf]
    %v71 = vld [vmem:[#allocation2 + $0x3c] sm:$0xff]
    %v72 = vld [vmem:[#allocation2 + $0x44] sm:$0xf]
    %v73 = vld [vmem:[#allocation2 + $0x48] sm:$0xff]
    %v74 = vld [vmem:[#allocation2 + $0x50] sm:$0xf]
    %v75 = vld [vmem:[#allocation2 + $0x54] sm:$0xff]
    %v76 = vld [vmem:[#allocation2 + $0x5c] sm:$0xf]
    %v77 = vld [vmem:[#allocation2 + $0x60] sm:$0xff]
    %v78 = vld [vmem:[#allocation2 + $0x68] sm:$0xf]
    %v79 = vld [vmem:[#allocation2 + $0x6c] sm:$0xff]
    %v80 = vld [vmem:[#allocation2 + $0x74] sm:$0xf]
    %v81 = vld [vmem:[#allocation2 + $0x78] sm:$0xff]
    %v82 = vld [vmem:[#allocation2 + $0x80] sm:$0xf]
    %v83 = vld [vmem:[#allocation2 + $0x84] sm:$0xff]
    %v84 = vld [vmem:[#allocation2 + $0x8c] sm:$0xf]
    %v85 = vld [vmem:[#allocation2 + $0x90] sm:$0xff]
    %v86 = vld [vmem:[#allocation2 + $0x98] sm:$0xf]
    %v87 = vld [vmem:[#allocation2 + $0x9c] sm:$0xff]
    %v88 = vld [vmem:[#allocation2 + $0xa4] sm:$0xf]
    %v89 = vld [vmem:[#allocation2 + $0xa8] sm:$0xff]
    %v90 = vld [vmem:[#allocation2 + $0xb0] sm:$0xf]
    %v91 = vld [vmem:[#allocation2 + $0xb4] sm:$0xff]
    %v92 = vld [vmem:[#allocation2 + $0xbc] sm:$0xf]
    %v93 = vld [vmem:[#allocation2 + $0xc0] sm:$0xff]
    %v94 = vld [vmem:[#allocation2 + $0xc8] sm:$0xf]
    %v95 = vld [vmem:[#allocation2 + $0xcc] sm:$0xff]
    %v96 = vld [vmem:[#allocation2 + $0xd4] sm:$0xf]
    %v97 = vld [vmem:[#allocation2 + $0xd8] sm:$0xff]
    %v98 = vld [vmem:[#allocation2 + $0xe0] sm:$0xf]
    %v99 = vld [vmem:[#allocation2 + $0xe4] sm:$0xff]
    %v100 = vld [vmem:[#allocation2 + $0xec] sm:$0xf]
    %v101 = vld [vmem:[#allocation2 + $0xf0] sm:$0xff]
    %v102 = vld [vmem:[#allocation2 + $0xf8] sm:$0xf]
    %v103 = vld [vmem:[#allocation2 + $0xfc] sm:$0xff]
    %v104 = vld [vmem:[#allocation2 + $0x104] sm:$0xf]
    %v105 = vld [vmem:[#allocation2 + $0x108] sm:$0xff]
    %v106 = vld [vmem:[#allocation2 + $0x110] sm:$0xf]
    %v107 = vld [vmem:[#allocation2 + $0x114] sm:$0xff]
    %v108 = vld [vmem:[#allocation2 + $0x11c] sm:$0xf]
    %v109 = vld [vmem:[#allocation2 + $0x120] sm:$0xff]
    %v110 = vld [vmem:[#allocation2 + $0x128] sm:$0xf]
    %v111 = vld [vmem:[#allocation2 + $0x12c] sm:$0xff]
    %v112 = vld [vmem:[#allocation2 + $0x134] sm:$0xf]
    %v113 = vld [vmem:[#allocation2 + $0x138] sm:$0xff]
    %v114 = vld [vmem:[#allocation2 + $0x140] sm:$0xf]
    %v115 = vld [vmem:[#allocation2 + $0x144] sm:$0xff]
    %v116 = vld [vmem:[#allocation2 + $0x14c] sm:$0xf]
    %v117 = vld [vmem:[#allocation2 + $0x150] sm:$0xff]
    %v118 = vld [vmem:[#allocation2 + $0x158] sm:$0xf]
    %v119 = vld [vmem:[#allocation2 + $0x15c] sm:$0xff]
    %v120 = vld [vmem:[#allocation2 + $0x164] sm:$0xf]
    %v121 = vld [vmem:[#allocation2 + $0x168] sm:$0xff]
    %v122 = vld [vmem:[#allocation2 + $0x170] sm:$0xf]
    %v123 = vld [vmem:[#allocation2 + $0x174] sm:$0xff]
    %v124 = vld [vmem:[#allocation2 + $0x17c] sm:$0xf]
    %v125 = vld [vmem:[#allocation2 + $0x180] sm:$0xff]
    %v126 = vld [vmem:[#allocation2 + $0x188] sm:$0xf]
    %v127 = vld [vmem:[#allocation2 + $0x18c] sm:$0xff]
    %v128 = vld [vmem:[#allocation2 + $0x194] sm:$0xf]
    %v129 = vld [vmem:[#allocation2 + $0x198] sm:$0xff]
    %v130 = vld [vmem:[#allocation2 + $0x1a0] sm:$0xf]
    %v131 = vld [vmem:[#allocation2 + $0x1a4] sm:$0xff]
    %v132 = vld [vmem:[#allocation2 + $0x1ac] sm:$0xf]
    %v133 = vld [vmem:[#allocation2 + $0x1b0] sm:$0xff]
    %v134 = vld [vmem:[#allocation2 + $0x1b8] sm:$0xf]
    %v135 = vld [vmem:[#allocation2 + $0x1bc] sm:$0xff]
    %v136 = vld [vmem:[#allocation2 + $0x1c4] sm:$0xf]
    %v137 = vld [vmem:[#allocation2 + $0x1c8] sm:$0xff]
    %v138 = vld [vmem:[#allocation2 + $0x1d0] sm:$0xf]
    %v139 = vld [vmem:[#allocation2 + $0x1d4] sm:$0xff]
    %v140 = vld [vmem:[#allocation2 + $0x1dc] sm:$0xf]
    %v141 = vld [vmem:[#allocation2 + $0x1e0] sm:$0xff]
    %v142 = vld [vmem:[#allocation2 + $0x1e8] sm:$0xf]
    %v143 = vld [vmem:[#allocation2 + $0x1ec] sm:$0xff]
    %v144 = vld [vmem:[#allocation2 + $0x1f4] sm:$0xf]
    %v145 = vld [vmem:[#allocation2 + $0x1f8] sm:$0xff]
    %v146 = vld [vmem:[#allocation2 + $0x200] sm:$0xf]
    %v147 = vld [vmem:[#allocation2 + $0x204] sm:$0xff]
    %v148 = vld [vmem:[#allocation2 + $0x20c] sm:$0xf]
    %v149 = vld [vmem:[#allocation2 + $0x210] sm:$0xff]
    %v150 = vld [vmem:[#allocation2 + $0x218] sm:$0xf]
    %v151 = vld [vmem:[#allocation2 + $0x21c] sm:$0xff]
    %v152 = vld [vmem:[#allocation2 + $0x224] sm:$0xf]
    %v153 = vld [vmem:[#allocation2 + $0x228] sm:$0xff]
    %v154 = vld [vmem:[#allocation2 + $0x230] sm:$0xf]
    %v155 = vld [vmem:[#allocation2 + $0x234] sm:$0xff]
    %v156 = vld [vmem:[#allocation2 + $0x23c] sm:$0xf]
    %v157 = vld [vmem:[#allocation2 + $0x240] sm:$0xff]
    %v158 = vld [vmem:[#allocation2 + $0x248] sm:$0xf]
    %v159 = vld [vmem:[#allocation2 + $0x24c] sm:$0xff]
    %v160 = vld [vmem:[#allocation2 + $0x254] sm:$0xf]
    %v161 = vld [vmem:[#allocation2 + $0x258] sm:$0xff]
    %v162 = vld [vmem:[#allocation2 + $0x260] sm:$0xf]
    %v163 = vld [vmem:[#allocation2 + $0x264] sm:$0xff]
    %v164 = vld [vmem:[#allocation2 + $0x26c] sm:$0xf]
    %v165 = vld [vmem:[#allocation2 + $0x270] sm:$0xff]
    %v166 = vld [vmem:[#allocation2 + $0x278] sm:$0xf]
    %v167 = vld [vmem:[#allocation2 + $0x27c] sm:$0xff]
    %v168 = vld [vmem:[#allocation2 + $0x284] sm:$0xf]
    %v169 = vld [vmem:[#allocation2 + $0x288] sm:$0xff]
    %v170 = vld [vmem:[#allocation2 + $0x290] sm:$0xf]
    %v171 = vld [vmem:[#allocation2 + $0x294] sm:$0xff]
    %v172 = vld [vmem:[#allocation2 + $0x29c] sm:$0xf]
    %v173 = vld [vmem:[#allocation2 + $0x2a0] sm:$0xff]
    %v174 = vld [vmem:[#allocation2 + $0x2a8] sm:$0xf]
    %v175 = vld [vmem:[#allocation2 + $0x2ac] sm:$0xff]
    %v176 = vld [vmem:[#allocation2 + $0x2b4] sm:$0xf]
    %v177 = vld [vmem:[#allocation2 + $0x2b8] sm:$0xff]
    %v178 = vld [vmem:[#allocation2 + $0x2c0] sm:$0xf]
    %v179 = vld [vmem:[#allocation2 + $0x2c4] sm:$0xff]
    %v180 = vld [vmem:[#allocation2 + $0x2cc] sm:$0xf]
    %v181 = vld [vmem:[#allocation2 + $0x2d0] sm:$0xff]
    %v182 = vld [vmem:[#allocation2 + $0x2d8] sm:$0xf]
    %v183 = vld [vmem:[#allocation2 + $0x2dc] sm:$0xff]
    %v184 = vld [vmem:[#allocation2 + $0x2e4] sm:$0xf]
    %v185 = vld [vmem:[#allocation2 + $0x2e8] sm:$0x33]
    %v186 = vld [vmem:[#allocation2 + $0x2f0] sm:$0x3]
    %v187 = vld [vmem:[%s2] sm:$0x7]
    %v189 = vlaneseq
    %v190 = vshrl.u32 %v189, 7
    %v191 = vsub.s32 0, %v190
    %v192 = vrot.slane %v187, %v191
    %v193 = vlaneseq
    %v194 = vshrl.u32 %v193, 7
    %v195 = vsub.s32 1, %v194
    %v196 = vrot.slane %v187, %v195
    %v197 = vlaneseq
    %v198 = vshrl.u32 %v197, 7
    %v199 = vsub.s32 2, %v198
    %v200 = vrot.slane %v187, %v199
    %v330 = vunpack.c.l.b16 %v61
    %v331 = vunpack.c.h.b16 %v61
    %v332 = vunpack.c.l.b16 %v62
    %v333 = vunpack.c.l.b16 %v63
    %v334 = vunpack.c.h.b16 %v63
    %v335 = vunpack.c.l.b16 %v64
    %v336 = vunpack.c.l.b16 %v65
    %v337 = vunpack.c.h.b16 %v65
    %v338 = vunpack.c.l.b16 %v66
    %v339 = vunpack.c.l.b16 %v67
    %v340 = vunpack.c.h.b16 %v67
    %v341 = vunpack.c.l.b16 %v68
    %v342 = vunpack.c.l.b16 %v69
    %v343 = vunpack.c.h.b16 %v69
    %v344 = vunpack.c.l.b16 %v70
    %v345 = vunpack.c.l.b16 %v71
    %v346 = vunpack.c.h.b16 %v71
    %v347 = vunpack.c.l.b16 %v72
    %v348 = vunpack.c.l.b16 %v73
    %v349 = vunpack.c.h.b16 %v73
    %v350 = vunpack.c.l.b16 %v74
    %v351 = vunpack.c.l.b16 %v75
    %v352 = vunpack.c.h.b16 %v75
    %v353 = vunpack.c.l.b16 %v76
    %v354 = vunpack.c.l.b16 %v77
    %v355 = vunpack.c.h.b16 %v77
    %v356 = vunpack.c.l.b16 %v78
    %v357 = vunpack.c.l.b16 %v79
    %v358 = vunpack.c.h.b16 %v79
    %v359 = vunpack.c.l.b16 %v80
    %v360 = vunpack.c.l.b16 %v81
    %v361 = vunpack.c.h.b16 %v81
    %v362 = vunpack.c.l.b16 %v82
    %v363 = vunpack.c.l.b16 %v83
    %v364 = vunpack.c.h.b16 %v83
    %v365 = vunpack.c.l.b16 %v84
    %v366 = vunpack.c.l.b16 %v85
    %v367 = vunpack.c.h.b16 %v85
    %v368 = vunpack.c.l.b16 %v86
    %v369 = vunpack.c.l.b16 %v87
    %v370 = vunpack.c.h.b16 %v87
    %v371 = vunpack.c.l.b16 %v88
    %v372 = vunpack.c.l.b16 %v89
    %v373 = vunpack.c.h.b16 %v89
    %v374 = vunpack.c.l.b16 %v90
    %v375 = vunpack.c.l.b16 %v91
    %v376 = vunpack.c.h.b16 %v91
    %v377 = vunpack.c.l.b16 %v92
    %v378 = vunpack.c.l.b16 %v93
    %v379 = vunpack.c.h.b16 %v93
    %v380 = vunpack.c.l.b16 %v94
    %v381 = vunpack.c.l.b16 %v95
    %v382 = vunpack.c.h.b16 %v95
    %v383 = vunpack.c.l.b16 %v96
    %v384 = vunpack.c.l.b16 %v97
    %v385 = vunpack.c.h.b16 %v97
    %v386 = vunpack.c.l.b16 %v98
    %v387 = vunpack.c.l.b16 %v99
    %v388 = vunpack.c.h.b16 %v99
    %v389 = vunpack.c.l.b16 %v100
    %v390 = vunpack.c.l.b16 %v101
    %v391 = vunpack.c.h.b16 %v101
    %v392 = vunpack.c.l.b16 %v102
    %v393 = vunpack.c.l.b16 %v103
    %v394 = vunpack.c.h.b16 %v103
    %v395 = vunpack.c.l.b16 %v104
    %v396 = vunpack.c.l.b16 %v105
    %v397 = vunpack.c.h.b16 %v105
    %v398 = vunpack.c.l.b16 %v106
    %v399 = vunpack.c.l.b16 %v107
    %v400 = vunpack.c.h.b16 %v107
    %v401 = vunpack.c.l.b16 %v108
    %v402 = vunpack.c.l.b16 %v109
    %v403 = vunpack.c.h.b16 %v109
    %v404 = vunpack.c.l.b16 %v110
    %v405 = vunpack.c.l.b16 %v111
    %v406 = vunpack.c.h.b16 %v111
    %v407 = vunpack.c.l.b16 %v112
    %v408 = vunpack.c.l.b16 %v113
    %v409 = vunpack.c.h.b16 %v113
    %v410 = vunpack.c.l.b16 %v114
    %v411 = vunpack.c.l.b16 %v115
    %v412 = vunpack.c.h.b16 %v115
    %v413 = vunpack.c.l.b16 %v116
    %v414 = vunpack.c.l.b16 %v117
    %v415 = vunpack.c.h.b16 %v117
    %v416 = vunpack.c.l.b16 %v118
    %v417 = vunpack.c.l.b16 %v119
    %v418 = vunpack.c.h.b16 %v119
    %v419 = vunpack.c.l.b16 %v120
    %v420 = vunpack.c.l.b16 %v121
    %v421 = vunpack.c.h.b16 %v121
    %v422 = vunpack.c.l.b16 %v122
    %v423 = vunpack.c.l.b16 %v123
    %v424 = vunpack.c.h.b16 %v123
    %v425 = vunpack.c.l.b16 %v124
    %v426 = vunpack.c.l.b16 %v125
    %v427 = vunpack.c.h.b16 %v125
    %v428 = vunpack.c.l.b16 %v126
    %v429 = vunpack.c.l.b16 %v127
    %v430 = vunpack.c.h.b16 %v127
    %v431 = vunpack.c.l.b16 %v128
    %v432 = vunpack.c.l.b16 %v129
    %v433 = vunpack.c.h.b16 %v129
    %v434 = vunpack.c.l.b16 %v130
    %v435 = vunpack.c.l.b16 %v131
    %v436 = vunpack.c.h.b16 %v131
    %v437 = vunpack.c.l.b16 %v132
    %v438 = vunpack.c.l.b16 %v133
    %v439 = vunpack.c.h.b16 %v133
    %v440 = vunpack.c.l.b16 %v134
    %v441 = vunpack.c.l.b16 %v135
    %v442 = vunpack.c.h.b16 %v135
    %v443 = vunpack.c.l.b16 %v136
    %v444 = vunpack.c.l.b16 %v137
    %v445 = vunpack.c.h.b16 %v137
    %v446 = vunpack.c.l.b16 %v138
    %v447 = vunpack.c.l.b16 %v139
    %v448 = vunpack.c.h.b16 %v139
    %v449 = vunpack.c.l.b16 %v140
    %v450 = vunpack.c.l.b16 %v141
    %v451 = vunpack.c.h.b16 %v141
    %v452 = vunpack.c.l.b16 %v142
    %v453 = vunpack.c.l.b16 %v143
    %v454 = vunpack.c.h.b16 %v143
    %v455 = vunpack.c.l.b16 %v144
    %v456 = vunpack.c.l.b16 %v145
    %v457 = vunpack.c.h.b16 %v145
    %v458 = vunpack.c.l.b16 %v146
    %v459 = vunpack.c.l.b16 %v147
    %v460 = vunpack.c.h.b16 %v147
    %v461 = vunpack.c.l.b16 %v148
    %v462 = vunpack.c.l.b16 %v149
    %v463 = vunpack.c.h.b16 %v149
    %v464 = vunpack.c.l.b16 %v150
    %v465 = vunpack.c.l.b16 %v151
    %v466 = vunpack.c.h.b16 %v151
    %v467 = vunpack.c.l.b16 %v152
    %v468 = vunpack.c.l.b16 %v153
    %v469 = vunpack.c.h.b16 %v153
    %v470 = vunpack.c.l.b16 %v154
    %v471 = vunpack.c.l.b16 %v155
    %v472 = vunpack.c.h.b16 %v155
    %v473 = vunpack.c.l.b16 %v156
    %v474 = vunpack.c.l.b16 %v157
    %v475 = vunpack.c.h.b16 %v157
    %v476 = vunpack.c.l.b16 %v158
    %v477 = vunpack.c.l.b16 %v159
    %v478 = vunpack.c.h.b16 %v159
    %v479 = vunpack.c.l.b16 %v160
    %v480 = vunpack.c.l.b16 %v161
    %v481 = vunpack.c.h.b16 %v161
    %v482 = vunpack.c.l.b16 %v162
    %v483 = vunpack.c.l.b16 %v163
    %v484 = vunpack.c.h.b16 %v163
    %v485 = vunpack.c.l.b16 %v164
    %v486 = vunpack.c.l.b16 %v165
    %v487 = vunpack.c.h.b16 %v165
    %v488 = vunpack.c.l.b16 %v166
    %v489 = vunpack.c.l.b16 %v167
    %v490 = vunpack.c.h.b16 %v167
    %v491 = vunpack.c.l.b16 %v168
    %v492 = vunpack.c.l.b16 %v169
    %v493 = vunpack.c.h.b16 %v169
    %v494 = vunpack.c.l.b16 %v170
    %v495 = vunpack.c.l.b16 %v171
    %v496 = vunpack.c.h.b16 %v171
    %v497 = vunpack.c.l.b16 %v172
    %v498 = vunpack.c.l.b16 %v173
    %v499 = vunpack.c.h.b16 %v173
    %v500 = vunpack.c.l.b16 %v174
    %v501 = vunpack.c.l.b16 %v175
    %v502 = vunpack.c.h.b16 %v175
    %v503 = vunpack.c.l.b16 %v176
    %v504 = vunpack.c.l.b16 %v177
    %v505 = vunpack.c.h.b16 %v177
    %v506 = vunpack.c.l.b16 %v178
    %v507 = vunpack.c.l.b16 %v179
    %v508 = vunpack.c.h.b16 %v179
    %v509 = vunpack.c.l.b16 %v180
    %v510 = vunpack.c.l.b16 %v181
    %v511 = vunpack.c.h.b16 %v181
    %v512 = vunpack.c.l.b16 %v182
    %v513 = vunpack.c.l.b16 %v183
    %v514 = vunpack.c.h.b16 %v183
    %v515 = vunpack.c.l.b16 %v184
    %v516 = vunpack.c.l.b16 %v185
    %v517 = vunpack.c.h.b16 %v185
    %v518 = vunpack.c.l.b16 %v186
    %v519 = vpack.c.b16 %v333, %v330
    %v520 = vpack.c.b16 %v334, %v331
    %v521 = vpack.c.b16 %v335, %v332
    %v522 = vpack.c.b16 %v339, %v336
    %v523 = vpack.c.b16 %v340, %v337
    %v524 = vpack.c.b16 %v341, %v338
    %v525 = vpack.c.b16 %v345, %v342
    %v526 = vpack.c.b16 %v346, %v343
    %v527 = vpack.c.b16 %v347, %v344
    %v528 = vpack.c.b16 %v351, %v348
    %v529 = vpack.c.b16 %v352, %v349
    %v530 = vpack.c.b16 %v353, %v350
    %v531 = vpack.c.b16 %v357, %v354
    %v532 = vpack.c.b16 %v358, %v355
    %v533 = vpack.c.b16 %v359, %v356
    %v534 = vpack.c.b16 %v363, %v360
    %v535 = vpack.c.b16 %v364, %v361
    %v536 = vpack.c.b16 %v365, %v362
    %v537 = vpack.c.b16 %v369, %v366
    %v538 = vpack.c.b16 %v370, %v367
    %v539 = vpack.c.b16 %v371, %v368
    %v540 = vpack.c.b16 %v375, %v372
    %v541 = vpack.c.b16 %v376, %v373
    %v542 = vpack.c.b16 %v377, %v374
    %v543 = vpack.c.b16 %v381, %v378
    %v544 = vpack.c.b16 %v382, %v379
    %v545 = vpack.c.b16 %v383, %v380
    %v546 = vpack.c.b16 %v387, %v384
    %v547 = vpack.c.b16 %v388, %v385
    %v548 = vpack.c.b16 %v389, %v386
    %v549 = vpack.c.b16 %v393, %v390
    %v550 = vpack.c.b16 %v394, %v391
    %v551 = vpack.c.b16 %v395, %v392
    %v552 = vpack.c.b16 %v399, %v396
    %v553 = vpack.c.b16 %v400, %v397
    %v554 = vpack.c.b16 %v401, %v398
    %v555 = vpack.c.b16 %v405, %v402
    %v556 = vpack.c.b16 %v406, %v403
    %v557 = vpack.c.b16 %v407, %v404
    %v558 = vpack.c.b16 %v411, %v408
    %v559 = vpack.c.b16 %v412, %v409
    %v560 = vpack.c.b16 %v413, %v410
    %v561 = vpack.c.b16 %v417, %v414
    %v562 = vpack.c.b16 %v418, %v415
    %v563 = vpack.c.b16 %v419, %v416
    %v564 = vpack.c.b16 %v423, %v420
    %v565 = vpack.c.b16 %v424, %v421
    %v566 = vpack.c.b16 %v425, %v422
    %v567 = vpack.c.b16 %v429, %v426
    %v568 = vpack.c.b16 %v430, %v427
    %v569 = vpack.c.b16 %v431, %v428
    %v570 = vpack.c.b16 %v435, %v432
    %v571 = vpack.c.b16 %v436, %v433
    %v572 = vpack.c.b16 %v437, %v434
    %v573 = vpack.c.b16 %v441, %v438
    %v574 = vpack.c.b16 %v442, %v439
    %v575 = vpack.c.b16 %v443, %v440
    %v576 = vpack.c.b16 %v447, %v444
    %v577 = vpack.c.b16 %v448, %v445
    %v578 = vpack.c.b16 %v449, %v446
    %v579 = vpack.c.b16 %v453, %v450
    %v580 = vpack.c.b16 %v454, %v451
    %v581 = vpack.c.b16 %v455, %v452
    %v582 = vpack.c.b16 %v459, %v456
    %v583 = vpack.c.b16 %v460, %v457
    %v584 = vpack.c.b16 %v461, %v458
    %v585 = vpack.c.b16 %v465, %v462
    %v586 = vpack.c.b16 %v466, %v463
    %v587 = vpack.c.b16 %v467, %v464
    %v588 = vpack.c.b16 %v471, %v468
    %v589 = vpack.c.b16 %v472, %v469
    %v590 = vpack.c.b16 %v473, %v470
    %v591 = vpack.c.b16 %v477, %v474
    %v592 = vpack.c.b16 %v478, %v475
    %v593 = vpack.c.b16 %v479, %v476
    %v594 = vpack.c.b16 %v483, %v480
    %v595 = vpack.c.b16 %v484, %v481
    %v596 = vpack.c.b16 %v485, %v482
    %v597 = vpack.c.b16 %v489, %v486
    %v598 = vpack.c.b16 %v490, %v487
    %v599 = vpack.c.b16 %v491, %v488
    %v600 = vpack.c.b16 %v495, %v492
    %v601 = vpack.c.b16 %v496, %v493
    %v602 = vpack.c.b16 %v497, %v494
    %v603 = vpack.c.b16 %v501, %v498
    %v604 = vpack.c.b16 %v502, %v499
    %v605 = vpack.c.b16 %v503, %v500
    %v606 = vpack.c.b16 %v507, %v504
    %v607 = vpack.c.b16 %v508, %v505
    %v608 = vpack.c.b16 %v509, %v506
    %v609 = vpack.c.b16 %v513, %v510
    %v610 = vpack.c.b16 %v514, %v511
    %v611 = vpack.c.b16 %v515, %v512
    %v612 = vpack.c.b16 %v516, %v516
    %v613 = vpack.c.b16 %v517, %v517
    %v614 = vpack.c.b16 %v518, %v518
    %vm708 = vcmask 949248
    %v710 = vsel %vm708, %v60, 0
    %vm712 = vcmask 1041408
    %v714 = vsel %vm712, %v612, 0
    %v717 = vsel %vm712, %v613, 0
    %v720 = vsel %vm712, %v614, 0
    %722 = vmatprep.subr.bf16.mxu0 %v520
    %723 = vmatpush1.bf16.msra.mxu0 %v519
    %724 = vmatprep.subr.bf16.mxu0 %v523
    %725 = vmatpush1.bf16.msra.mxu0 %v522
    %726 = vmatprep.subr.bf16.mxu0 %v526
    %727 = vmatpush1.bf16.msra.mxu0 %v525
    %728 = vmatprep.subr.bf16.mxu0 %v529
    %729 = vmatpush1.bf16.msra.mxu0 %v528
    %730 = vmatprep.subr.bf16.mxu0 %v532
    %731 = vmatpush1.bf16.msra.mxu0 %v531
    %732 = vmatprep.subr.bf16.mxu0 %v535
    %733 = vmatpush1.bf16.msra.mxu0 %v534
    %734 = vmatprep.subr.bf16.mxu0 %v538
    %735 = vmatpush1.bf16.msra.mxu0 %v537
    %736 = vmatprep.subr.bf16.mxu0 %v541
    %737 = vmatpush1.bf16.msra.mxu0 %v540
    %738 = vmatprep.subr.bf16.mxu0 %v544
    %739 = vmatpush1.bf16.msra.mxu0 %v543
    %740 = vmatprep.subr.bf16.mxu0 %v547
    %741 = vmatpush1.bf16.msra.mxu0 %v546
    %742 = vmatprep.subr.bf16.mxu0 %v550
    %743 = vmatpush1.bf16.msra.mxu0 %v549
    %744 = vmatprep.subr.bf16.mxu0 %v553
    %745 = vmatpush1.bf16.msra.mxu0 %v552
    %746 = vmatprep.subr.bf16.mxu0 %v556
    %747 = vmatpush1.bf16.msra.mxu0 %v555
    %748 = vmatprep.subr.bf16.mxu0 %v559
    %749 = vmatpush1.bf16.msra.mxu0 %v558
    %750 = vmatprep.subr.bf16.mxu0 %v562
    %751 = vmatpush1.bf16.msra.mxu0 %v561
    %752 = vmatprep.subr.bf16.mxu0 %v565
    %753 = vmatpush1.bf16.msra.mxu0 %v564
    %754 = vmatprep.mubr.bf16.mxu0 %v58
    %755 = vmatmul.mubr.bf16.gmra.mrb[0].mxu0 %v57
    %v756 = vpop.f32.mrb[0].mxu0
    %v757 = vadd.f32 %v192, %v756
    %v758 = vpop.f32.mrb[0].mxu0
    %v759 = vadd.f32 %v196, %v758
    %v760 = vpop.f32.mrb[0].mxu0
    %v761 = vadd.f32 %v192, %v760
    %v762 = vpop.f32.mrb[0].mxu0
    %v763 = vadd.f32 %v196, %v762
    %764 = vdwg.mxu0
    %765 = vmatprep.subr.bf16.mxu0 %v568
    %766 = vmatpush1.bf16.msra.mxu0 %v567
    %767 = vmatprep.subr.bf16.mxu0 %v571
    %768 = vmatpush1.bf16.msra.mxu0 %v570
    %769 = vmatprep.subr.bf16.mxu0 %v574
    %770 = vmatpush1.bf16.msra.mxu0 %v573
    %771 = vmatprep.subr.bf16.mxu0 %v577
    %772 = vmatpush1.bf16.msra.mxu0 %v576
    %773 = vmatprep.subr.bf16.mxu0 %v580
    %774 = vmatpush1.bf16.msra.mxu0 %v579
    %775 = vmatprep.subr.bf16.mxu0 %v583
    %776 = vmatpush1.bf16.msra.mxu0 %v582
    %777 = vmatprep.subr.bf16.mxu0 %v586
    %778 = vmatpush1.bf16.msra.mxu0 %v585
    %779 = vmatprep.subr.bf16.mxu0 %v589
    %780 = vmatpush1.bf16.msra.mxu0 %v588
    %781 = vmatprep.subr.bf16.mxu0 %v592
    %782 = vmatpush1.bf16.msra.mxu0 %v591
    %783 = vmatprep.subr.bf16.mxu0 %v595
    %784 = vmatpush1.bf16.msra.mxu0 %v594
    %785 = vmatprep.subr.bf16.mxu0 %v598
    %786 = vmatpush1.bf16.msra.mxu0 %v597
    %787 = vmatprep.subr.bf16.mxu0 %v601
    %788 = vmatpush1.bf16.msra.mxu0 %v600
    %789 = vmatprep.subr.bf16.mxu0 %v604
    %790 = vmatpush1.bf16.msra.mxu0 %v603
    %791 = vmatprep.subr.bf16.mxu0 %v607
    %792 = vmatpush1.bf16.msra.mxu0 %v606
    %793 = vmatprep.subr.bf16.mxu0 %v610
    %794 = vmatpush1.bf16.msra.mxu0 %v609
    %795 = vmatprep.subr.bf16.mxu0 %v717
    %796 = vmatpush1.bf16.msra.mxu0 %v714
    %797 = vmatprep.mubr.bf16.mxu0 %v710
    %798 = vmatmul.mubr.bf16.gmra.mrb[0].mxu0 %v59
    %v799 = vpop.f32.mrb[0].mxu0
    %v800 = vadd.f32 %v757, %v799
    %v801 = vpop.f32.mrb[0].mxu0
    %v802 = vadd.f32 %v759, %v801
    %v803 = vpop.f32.mrb[0].mxu0
    %v804 = vadd.f32 %v761, %v803
    %v805 = vpop.f32.mrb[0].mxu0
    %v806 = vadd.f32 %v763, %v805
    %807 = vdwg.mxu0
    %808 = vmatprep.subr.bf16.mxu0 0
    %809 = vmatpush1.bf16.msra.mxu0 %v521
    %810 = vmatprep.subr.bf16.mxu0 0
    %811 = vmatpush1.bf16.msra.mxu0 %v524
    %812 = vmatprep.subr.bf16.mxu0 0
    %813 = vmatpush1.bf16.msra.mxu0 %v527
    %814 = vmatprep.subr.bf16.mxu0 0
    %815 = vmatpush1.bf16.msra.mxu0 %v530
    %816 = vmatprep.subr.bf16.mxu0 0
    %817 = vmatpush1.bf16.msra.mxu0 %v533
    %818 = vmatprep.subr.bf16.mxu0 0
    %819 = vmatpush1.bf16.msra.mxu0 %v536
    %820 = vmatprep.subr.bf16.mxu0 0
    %821 = vmatpush1.bf16.msra.mxu0 %v539
    %822 = vmatprep.subr.bf16.mxu0 0
    %823 = vmatpush1.bf16.msra.mxu0 %v542
    %824 = vmatprep.subr.bf16.mxu0 0
    %825 = vmatpush1.bf16.msra.mxu0 %v545
    %826 = vmatprep.subr.bf16.mxu0 0
    %827 = vmatpush1.bf16.msra.mxu0 %v548
    %828 = vmatprep.subr.bf16.mxu0 0
    %829 = vmatpush1.bf16.msra.mxu0 %v551
    %830 = vmatprep.subr.bf16.mxu0 0
    %831 = vmatpush1.bf16.msra.mxu0 %v554
    %832 = vmatprep.subr.bf16.mxu0 0
    %833 = vmatpush1.bf16.msra.mxu0 %v557
    %834 = vmatprep.subr.bf16.mxu0 0
    %835 = vmatpush1.bf16.msra.mxu0 %v560
    %836 = vmatprep.subr.bf16.mxu0 0
    %837 = vmatpush1.bf16.msra.mxu0 %v563
    %838 = vmatprep.subr.bf16.mxu0 0
    %839 = vmatpush1.bf16.msra.mxu0 %v566
    %840 = vmatprep.mubr.bf16.mxu0 %v58
    %841 = vmatmul.mubr.bf16.gmra.mrb[0].mxu0 %v57
    %v842 = vpop.f32.mrb[0].mxu0
    %v843 = vadd.f32 %v200, %v842
    %v844 = vpop.f32.mrb[0].mxu0
    %v845 = vpop.f32.mrb[0].mxu0
    %v846 = vadd.f32 %v200, %v845
    %v847 = vpop.f32.mrb[0].mxu0
    %848 = vdwg.mxu0
    %849 = vmatprep.subr.bf16.mxu0 0
    %850 = vmatpush1.bf16.msra.mxu0 %v569
    %851 = vmatprep.subr.bf16.mxu0 0
    %852 = vmatpush1.bf16.msra.mxu0 %v572
    %853 = vmatprep.subr.bf16.mxu0 0
    %854 = vmatpush1.bf16.msra.mxu0 %v575
    %855 = vmatprep.subr.bf16.mxu0 0
    %856 = vmatpush1.bf16.msra.mxu0 %v578
    %857 = vmatprep.subr.bf16.mxu0 0
    %858 = vmatpush1.bf16.msra.mxu0 %v581
    %859 = vmatprep.subr.bf16.mxu0 0
    %860 = vmatpush1.bf16.msra.mxu0 %v584
    %861 = vmatprep.subr.bf16.mxu0 0
    %862 = vmatpush1.bf16.msra.mxu0 %v587
    %863 = vmatprep.subr.bf16.mxu0 0
    %864 = vmatpush1.bf16.msra.mxu0 %v590
    %865 = vmatprep.subr.bf16.mxu0 0
    %866 = vmatpush1.bf16.msra.mxu0 %v593
    %867 = vmatprep.subr.bf16.mxu0 0
    %868 = vmatpush1.bf16.msra.mxu0 %v596
    %869 = vmatprep.subr.bf16.mxu0 0
    %870 = vmatpush1.bf16.msra.mxu0 %v599
    %871 = vmatprep.subr.bf16.mxu0 0
    %872 = vmatpush1.bf16.msra.mxu0 %v602
    %873 = vmatprep.subr.bf16.mxu0 0
    %874 = vmatpush1.bf16.msra.mxu0 %v605
    %875 = vmatprep.subr.bf16.mxu0 0
    %876 = vmatpush1.bf16.msra.mxu0 %v608
    %877 = vmatprep.subr.bf16.mxu0 0
    %878 = vmatpush1.bf16.msra.mxu0 %v611
    %879 = vmatprep.subr.bf16.mxu0 0
    %880 = vmatpush1.bf16.msra.mxu0 %v720
    %881 = vmatprep.mubr.bf16.mxu0 %v710
    %882 = vmatmul.mubr.bf16.gmra.mrb[0].mxu0 %v59
    %v883 = vpop.f32.mrb[0].mxu0
    %v884 = vadd.f32 %v843, %v883
    %v885 = vpop.f32.mrb[0].mxu0
    %v886 = vpop.f32.mrb[0].mxu0
    %v887 = vadd.f32 %v846, %v886
    %v888 = vpop.f32.mrb[0].mxu0
    %889 = vdwg.mxu0
    %v890 = vpack.c.bf16 %v804, %v800
    %v891 = vpack.c.bf16 %v806, %v802
    %v892 = vpack.c.bf16 %v887, %v884
    %v893 = vld [vmem:[#allocation4] sm:$0xf]
    %v894 = vld [vmem:[#allocation4 + $0x4] sm:$0xf]
    %v895 = vld [vmem:[#allocation4 + $0x8] sm:$0xf]
    %v896 = vld [vmem:[#allocation4 + $0xc] sm:$0xf]
    %v897 = vld [vmem:[#allocation4 + $0x10] sm:$0xf]
    %v898 = vld [vmem:[#allocation4 + $0x14] sm:$0xf]
    %v899 = vld [vmem:[#allocation4 + $0x18] sm:$0xf]
    %v900 = vld [vmem:[#allocation4 + $0x1c] sm:$0xf]
    %v901 = vld [vmem:[#allocation4 + $0x20] sm:$0xf]
    %v902 = vld [vmem:[#allocation4 + $0x24] sm:$0xf]
    %v903 = vld [vmem:[#allocation4 + $0x28] sm:$0xf]
    %v904 = vld [vmem:[#allocation4 + $0x2c] sm:$0xf]
    %v905 = vld [vmem:[#allocation4 + $0x30] sm:$0xf]
    %v906 = vld [vmem:[#allocation4 + $0x34] sm:$0xf]
    %v907 = vld [vmem:[#allocation4 + $0x38] sm:$0xf]
    %v908 = vld [vmem:[#allocation4 + $0x3c] sm:$0xf]
    %v909 = vld [vmem:[#allocation4 + $0x40] sm:$0xf]
    %v910 = vld [vmem:[#allocation4 + $0x44] sm:$0xf]
    %v911 = vld [vmem:[#allocation4 + $0x48] sm:$0xf]
    %v912 = vld [vmem:[#allocation4 + $0x4c] sm:$0xf]
    %v913 = vld [vmem:[#allocation4 + $0x50] sm:$0xf]
    %v914 = vld [vmem:[#allocation4 + $0x54] sm:$0xf]
    %v915 = vld [vmem:[#allocation4 + $0x58] sm:$0xf]
    %v916 = vld [vmem:[#allocation4 + $0x5c] sm:$0xf]
    %v917 = vld [vmem:[#allocation4 + $0x60] sm:$0xf]
    %v918 = vld [vmem:[#allocation4 + $0x64] sm:$0xf]
    %v919 = vld [vmem:[#allocation4 + $0x68] sm:$0xf]
    %v920 = vld [vmem:[#allocation4 + $0x6c] sm:$0xf]
    %v921 = vld [vmem:[#allocation4 + $0x70] sm:$0xf]
    %v922 = vld [vmem:[#allocation4 + $0x74] sm:$0xf]
    %v923 = vld [vmem:[#allocation4 + $0x78] sm:$0xf]
    %v924 = vld [vmem:[#allocation4 + $0x7c] sm:$0xf]
    %v925 = vld [vmem:[#allocation4 + $0x80] sm:$0xf]
    %v926 = vld [vmem:[#allocation4 + $0x84] sm:$0xf]
    %v927 = vld [vmem:[#allocation4 + $0x88] sm:$0xf]
    %v928 = vld [vmem:[#allocation4 + $0x8c] sm:$0xf]
    %v929 = vld [vmem:[#allocation4 + $0x90] sm:$0xf]
    %v930 = vld [vmem:[#allocation4 + $0x94] sm:$0xf]
    %v931 = vld [vmem:[#allocation4 + $0x98] sm:$0xf]
    %v932 = vld [vmem:[#allocation4 + $0x9c] sm:$0xf]
    %v933 = vld [vmem:[#allocation4 + $0xa0] sm:$0xf]
    %v934 = vld [vmem:[#allocation4 + $0xa4] sm:$0xf]
    %v935 = vld [vmem:[#allocation4 + $0xa8] sm:$0xf]
    %v936 = vld [vmem:[#allocation4 + $0xac] sm:$0xf]
    %v937 = vld [vmem:[#allocation4 + $0xb0] sm:$0xf]
    %v938 = vld [vmem:[#allocation4 + $0xb4] sm:$0xf]
    %v939 = vld [vmem:[#allocation4 + $0xb8] sm:$0xf]
    %v940 = vld [vmem:[#allocation4 + $0xbc] sm:$0xf]
    %v941 = vld [vmem:[%s4] sm:$0x1]
    %v943 = vlaneseq
    %v944 = vshrl.u32 %v943, 7
    %v945 = vsub.s32 0, %v944
    %v946 = vrot.slane %v941, %v945
    %v996 = vunpack.c.l.b16 %v893
    %v997 = vunpack.c.l.b16 %v894
    %v998 = vunpack.c.l.b16 %v895
    %v999 = vunpack.c.l.b16 %v896
    %v1000 = vunpack.c.l.b16 %v897
    %v1001 = vunpack.c.l.b16 %v898
    %v1002 = vunpack.c.l.b16 %v899
    %v1003 = vunpack.c.l.b16 %v900
    %v1004 = vunpack.c.l.b16 %v901
    %v1005 = vunpack.c.l.b16 %v902
    %v1006 = vunpack.c.l.b16 %v903
    %v1007 = vunpack.c.l.b16 %v904
    %v1008 = vunpack.c.l.b16 %v905
    %v1009 = vunpack.c.l.b16 %v906
    %v1010 = vunpack.c.l.b16 %v907
    %v1011 = vunpack.c.l.b16 %v908
    %v1012 = vunpack.c.l.b16 %v909
    %v1013 = vunpack.c.l.b16 %v910
    %v1014 = vunpack.c.l.b16 %v911
    %v1015 = vunpack.c.l.b16 %v912
    %v1016 = vunpack.c.l.b16 %v913
    %v1017 = vunpack.c.l.b16 %v914
    %v1018 = vunpack.c.l.b16 %v915
    %v1019 = vunpack.c.l.b16 %v916
    %v1020 = vunpack.c.l.b16 %v917
    %v1021 = vunpack.c.l.b16 %v918
    %v1022 = vunpack.c.l.b16 %v919
    %v1023 = vunpack.c.l.b16 %v920
    %v1024 = vunpack.c.l.b16 %v921
    %v1025 = vunpack.c.l.b16 %v922
    %v1026 = vunpack.c.l.b16 %v923
    %v1027 = vunpack.c.l.b16 %v924
    %v1028 = vunpack.c.l.b16 %v925
    %v1029 = vunpack.c.l.b16 %v926
    %v1030 = vunpack.c.l.b16 %v927
    %v1031 = vunpack.c.l.b16 %v928
    %v1032 = vunpack.c.l.b16 %v929
    %v1033 = vunpack.c.l.b16 %v930
    %v1034 = vunpack.c.l.b16 %v931
    %v1035 = vunpack.c.l.b16 %v932
    %v1036 = vunpack.c.l.b16 %v933
    %v1037 = vunpack.c.l.b16 %v934
    %v1038 = vunpack.c.l.b16 %v935
    %v1039 = vunpack.c.l.b16 %v936
    %v1040 = vunpack.c.l.b16 %v937
    %v1041 = vunpack.c.l.b16 %v938
    %v1042 = vunpack.c.l.b16 %v939
    %v1043 = vunpack.c.l.b16 %v940
    %v1044 = vpack.c.b16 %v997, %v996
    %v1045 = vpack.c.b16 %v999, %v998
    %v1046 = vpack.c.b16 %v1001, %v1000
    %v1047 = vpack.c.b16 %v1003, %v1002
    %v1048 = vpack.c.b16 %v1005, %v1004
    %v1049 = vpack.c.b16 %v1007, %v1006
    %v1050 = vpack.c.b16 %v1009, %v1008
    %v1051 = vpack.c.b16 %v1011, %v1010
    %v1052 = vpack.c.b16 %v1013, %v1012
    %v1053 = vpack.c.b16 %v1015, %v1014
    %v1054 = vpack.c.b16 %v1017, %v1016
    %v1055 = vpack.c.b16 %v1019, %v1018
    %v1056 = vpack.c.b16 %v1021, %v1020
    %v1057 = vpack.c.b16 %v1023, %v1022
    %v1058 = vpack.c.b16 %v1025, %v1024
    %v1059 = vpack.c.b16 %v1027, %v1026
    %v1060 = vpack.c.b16 %v1029, %v1028
    %v1061 = vpack.c.b16 %v1031, %v1030
    %v1062 = vpack.c.b16 %v1033, %v1032
    %v1063 = vpack.c.b16 %v1035, %v1034
    %v1064 = vpack.c.b16 %v1037, %v1036
    %v1065 = vpack.c.b16 %v1039, %v1038
    %v1066 = vpack.c.b16 %v1041, %v1040
    %v1067 = vpack.c.b16 %v1043, %v1042
    %1092 = vmatprep.subr.bf16.mxu0 0
    %1093 = vmatpush1.bf16.msra.mxu0 %v1044
    %1094 = vmatprep.subr.bf16.mxu0 0
    %1095 = vmatpush1.bf16.msra.mxu0 %v1045
    %1096 = vmatprep.subr.bf16.mxu0 0
    %1097 = vmatpush1.bf16.msra.mxu0 %v1046
    %1098 = vmatprep.subr.bf16.mxu0 0
    %1099 = vmatpush1.bf16.msra.mxu0 %v1047
    %1100 = vmatprep.subr.bf16.mxu0 0
    %1101 = vmatpush1.bf16.msra.mxu0 %v1048
    %1102 = vmatprep.subr.bf16.mxu0 0
    %1103 = vmatpush1.bf16.msra.mxu0 %v1049
    %1104 = vmatprep.subr.bf16.mxu0 0
    %1105 = vmatpush1.bf16.msra.mxu0 %v1050
    %1106 = vmatprep.subr.bf16.mxu0 0
    %1107 = vmatpush1.bf16.msra.mxu0 %v1051
    %1108 = vmatprep.subr.bf16.mxu0 0
    %1109 = vmatpush1.bf16.msra.mxu0 %v1052
    %1110 = vmatprep.subr.bf16.mxu0 0
    %1111 = vmatpush1.bf16.msra.mxu0 %v1053
    %1112 = vmatprep.subr.bf16.mxu0 0
    %1113 = vmatpush1.bf16.msra.mxu0 %v1054
    %1114 = vmatprep.subr.bf16.mxu0 0
    %1115 = vmatpush1.bf16.msra.mxu0 %v1055
    %1116 = vmatprep.subr.bf16.mxu0 0
    %1117 = vmatpush1.bf16.msra.mxu0 %v1056
    %1118 = vmatprep.subr.bf16.mxu0 0
    %1119 = vmatpush1.bf16.msra.mxu0 %v1057
    %1120 = vmatprep.subr.bf16.mxu0 0
    %1121 = vmatpush1.bf16.msra.mxu0 %v1058
    %1122 = vmatprep.subr.bf16.mxu0 0
    %1123 = vmatpush1.bf16.msra.mxu0 %v1059
    %1124 = vmatprep.mubr.bf16.mxu0 %v891
    %1125 = vmatmul.mubr.bf16.gmra.mrb[0].mxu0 %v890
    %v1126 = vpop.f32.mrb[0].mxu0
    %v1127 = vadd.f32 %v946, %v1126
    %v1128 = vpop.f32.mrb[0].mxu0
    %v1129 = vpop.f32.mrb[0].mxu0
    %v1130 = vadd.f32 %v946, %v1129
    %v1131 = vpop.f32.mrb[0].mxu0
    %1132 = vdwg.mxu0
    %1133 = vmatprep.subr.bf16.mxu0 0
    %1134 = vmatpush1.bf16.msra.mxu0 %v1060
    %1135 = vmatprep.subr.bf16.mxu0 0
    %1136 = vmatpush1.bf16.msra.mxu0 %v1061
    %1137 = vmatprep.subr.bf16.mxu0 0
    %1138 = vmatpush1.bf16.msra.mxu0 %v1062
    %1139 = vmatprep.subr.bf16.mxu0 0
    %1140 = vmatpush1.bf16.msra.mxu0 %v1063
    %1141 = vmatprep.subr.bf16.mxu0 0
    %1142 = vmatpush1.bf16.msra.mxu0 %v1064
    %1143 = vmatprep.subr.bf16.mxu0 0
    %1144 = vmatpush1.bf16.msra.mxu0 %v1065
    %1145 = vmatprep.subr.bf16.mxu0 0
    %1146 = vmatpush1.bf16.msra.mxu0 %v1066
    %1147 = vmatprep.subr.bf16.mxu0 0
    %1148 = vmatpush1.bf16.msra.mxu0 %v1067
    %1149 = vmatprep.subr.bf16.mxu0 0
    %1150 = vmatpush1.bf16.msra.mxu0 0
    %1151 = vmatprep.subr.bf16.mxu0 0
    %1152 = vmatpush1.bf16.msra.mxu0 0
    %1153 = vmatprep.subr.bf16.mxu0 0
    %1154 = vmatpush1.bf16.msra.mxu0 0
    %1155 = vmatprep.subr.bf16.mxu0 0
    %1156 = vmatpush1.bf16.msra.mxu0 0
    %1157 = vmatprep.subr.bf16.mxu0 0
    %1158 = vmatpush1.bf16.msra.mxu0 0
    %1159 = vmatprep.subr.bf16.mxu0 0
    %1160 = vmatpush1.bf16.msra.mxu0 0
    %1161 = vmatprep.subr.bf16.mxu0 0
    %1162 = vmatpush1.bf16.msra.mxu0 0
    %1163 = vmatprep.subr.bf16.mxu0 0
    %1164 = vmatpush1.bf16.msra.mxu0 0
    %1165 = vmatprep.mubr.bf16.mxu0 0
    %1166 = vmatmul.mubr.bf16.gmra.mrb[0].mxu0 %v892
    %v1167 = vpop.f32.mrb[0].mxu0
    %v1168 = vadd.f32 %v1127, %v1167
    %v1169 = vpop.f32.mrb[0].mxu0
    %v1170 = vpop.f32.mrb[0].mxu0
    %v1171 = vadd.f32 %v1130, %v1170
    %v1172 = vpop.f32.mrb[0].mxu0
    %1173 = vdwg.mxu0
    %1174 = vmax.xlane.f32.xlu0 %v1168
    %v1175 = vpop.xlane.xlu0 %1174
    %1176 = vmax.xlane.f32.xlu0 %v1171
    %v1177 = vpop.xlane.xlu0 %1176
    %v1178 = vsub.f32 %v1168, %v1175
    %v1179 = vsub.f32 %v1171, %v1177
    %v1180 = vmul.f32 %v1178, 1.442695
    %v1181 = vpow.pop %v1180
    %v1182 = vmul.f32 %v1179, 1.442695
    %v1183 = vpow.pop %v1182
    %1184 = vadd.xlane.f32.xlu0 %v1181
    %v1185 = vpop.xlane.xlu0 %1184
    %1186 = vadd.xlane.f32.xlu0 %v1183
    %v1187 = vpop.xlane.xlu0 %1186
    %v1188 = vlog2.pop %v1185
    %v1189 = vmul.f32 %v1188, 0.6931472
    %v1190 = vlog2.pop %v1187
    %v1191 = vmul.f32 %v1190, 0.6931472
    %v1192 = vsub.f32 %v1178, %v1189
    %v1193 = vsub.f32 %v1179, %v1191
    %v1194 = vpack.c.bf16 %v1193, %v1192
    %v1196 = vunpack.c.l.b16 %v1194
    %v1197 = vunpack.c.h.b16 %v1194
    %v1198 = vpack.c.b16 %v1196, %v1196
    %v1199 = vpack.c.b16 %v1197, %v1197
    %1202 = vst [vmem:[%s5] sm:$0xf] %v1198
    %1203 = vst [vmem:[%s5 + $0x4] sm:$0xf] %v1199
    // Predicated region
    $region30: #{_lambda_.1} parent=1 // pred_check
      _
    $region31: #{_lambda_.1} parent=1 // pred_check_branch
      %1205 = sbr.rel (0) target = $region33
    $region32: #{_lambda_.1} parent=1 // pred_region
      _
    $region33: #{_lambda_.1} parent=1 // pred_fallthru
      _
    // Predicated region
    $region34: #{_lambda_.1} parent=1 // pred_check
      _
    $region35: #{_lambda_.1} parent=1 // pred_check_branch
      %1207 = sbr.rel (0) target = $region37
    $region36: #{_lambda_.1} parent=1 // pred_region
      _
    $region37: #{_lambda_.1} parent=1 // pred_fallthru
      _
    %1208 = vsyncpa [#allocation3], 1
    %1209 = vsyncpa [#allocation5], 1

</llo_original>
